<compile_context>
chip_gen: v5e
topology: v5e:2x2
jax: 0.10.0
libtpu: 0.0.40
codegen_flags: <defaults>
</compile_context>

<pallas_src>
import functools

import jax
import jax.numpy as jnp
from jax.experimental import pallas as pl
from jax.experimental.pallas import tpu as pltpu

FEAT = 64               # logical feature width of the PyTorch module
PACK = 2                # logical rows packed per 128-lane vector row
LANES = FEAT * PACK     # 128 -> lane-dense loads/stores
TILE_B2_MAX = 4096      # max packed rows per tile (= 8192 logical rows)
SPLIT_B2 = 512          # above this many packed rows, force an even grid >= 2


def _round_up(n, m):
    return ((n + m - 1) // m) * m


def _cdiv(a, b):
    return -(-a // b)


def bp_net_kernel(x_ref, w1_ref, b1_ref, w2_ref, b2_ref, w3_ref, b3_ref, o_ref):
    # x_ref : [tile_b2, 128] f32    (two logical rows packed per vector row)
    # w*_ref: [128, 128]     bf16   (block-diagonal, [in, out] on each block)
    # b*_ref: [1, 128]       f32    (bias tiled twice)
    # o_ref : [tile_b2, 128] bf16
    x = x_ref[...].astype(jnp.bfloat16)   # cast in-kernel (hidden under MXU)

    # layer1: Linear + ReLU (bf16 MXU inputs, f32 accumulate / elementwise)
    h1 = jnp.dot(x, w1_ref[...], preferred_element_type=jnp.float32) + b1_ref[...]
    h1 = jnp.maximum(h1, 0.0)

    # layer2: Linear + ReLU
    h2 = jnp.dot(h1.astype(jnp.bfloat16), w2_ref[...],
                 preferred_element_type=jnp.float32) + b2_ref[...]
    h2 = jnp.maximum(h2, 0.0)

    # layer3: Linear
    z = jnp.dot(h2.astype(jnp.bfloat16), w3_ref[...],
                preferred_element_type=jnp.float32) + b3_ref[...]

    # Softmax per 64-lane half. A single full-row max is valid for both halves
    # (softmax is shift-invariant per segment); only the sums must be segmented,
    # and the right-half sum is derived from (total - left) to save an XLU pass.
    lane = jax.lax.broadcasted_iota(jnp.int32, z.shape, 1)
    left = lane < FEAT
    m = jnp.max(z, axis=-1, keepdims=True)
    e = jnp.exp(z - m)
    s_all = jnp.sum(e, axis=-1, keepdims=True)
    s_l = jnp.sum(jnp.where(left, e, 0.0), axis=-1, keepdims=True)
    s = jnp.where(left, s_l, s_all - s_l)
    o_ref[...] = (e * pl.reciprocal(s, approx=True)).astype(o_ref.dtype)


def prepare_params(params):
    """One-time (init-time) repack of PyTorch-layout params for the kernel."""
    def pack_w(w):                        # w: [out, in] (PyTorch nn.Linear layout)
        wt = w.T.astype(jnp.bfloat16)     # [in, out] so the kernel computes x @ W
        z = jnp.zeros_like(wt)
        top = jnp.concatenate([wt, z], axis=1)
        bot = jnp.concatenate([z, wt], axis=1)
        return jnp.concatenate([top, bot], axis=0)          # [128, 128] block-diag

    def pack_b(b):
        return jnp.tile(b.astype(jnp.float32), PACK).reshape(1, LANES)

    return dict(
        w1=pack_w(params["w1"]), b1=pack_b(params["b1"]),
        w2=pack_w(params["w2"]), b2=pack_b(params["b2"]),
        w3=pack_w(params["w3"]), b3=pack_b(params["b3"]),
    )


def _choose_tiling(B):
    """Pick (tile_b2, grid, B2p) for B logical rows (all static Python ints)."""
    B2 = _cdiv(B, PACK)
    B2_16 = _round_up(max(B2, 16), 16)       # 16-row granularity (bf16 sublanes)
    if B2_16 <= SPLIT_B2:
        return B2_16, 1, B2_16               # tiny batch: single tile
    # Large batch: smallest EVEN step count whose tile fits TILE_B2_MAX, so
    # v7x's two TensorCores each get the same number of steps.
    steps = 2
    while _round_up(_cdiv(B2_16, steps), 16) > TILE_B2_MAX:
        steps += 2
    tile_b2 = _round_up(_cdiv(B2_16, steps), 16)
    return tile_b2, steps, tile_b2 * steps


@functools.partial(jax.jit, static_argnames=())
def bp_net_forward(x, packed):
    """x: [B, 64] f32. packed: output of prepare_params.

    Returns [B, 64] softmax probabilities in bf16 (cast to f32 outside if the
    caller requires f32; kept bf16 here to halve HBM writeback).
    """
    B = x.shape[0]
    tile_b2, grid, B2p = _choose_tiling(B)

    # Pad only the ragged tail (in the input's native dtype -- no extra cast
    # pass); the [B, 64] -> [B/2, 128] row-major reshape is free.
    pad_rows = B2p * PACK - B
    if pad_rows:
        x = jnp.pad(x, ((0, pad_rows), (0, 0)))
    x_packed = x.reshape(B2p, LANES)

    in_row_spec = pl.BlockSpec((tile_b2, LANES), lambda i: (i, 0))
    out_row_spec = pl.BlockSpec((tile_b2, LANES), lambda i: (i, 0))
    w_spec = pl.BlockSpec((LANES, LANES), lambda i: (0, 0))   # resident in VMEM
    b_spec = pl.BlockSpec((1, LANES), lambda i: (0, 0))

    cost = pl.CostEstimate(
        flops=3 * 2 * B2p * LANES * LANES,
        transcendentals=B2p * LANES,
        bytes_accessed=(B2p * LANES * x_packed.dtype.itemsize   # x (native dtype)
                        + B2p * LANES * 2                       # out (bf16)
                        + 3 * LANES * LANES * 2                 # weights (bf16)
                        + 3 * LANES * 4),                       # biases (f32)
    )

    out_packed = pl.pallas_call(
        bp_net_kernel,
        out_shape=jax.ShapeDtypeStruct((B2p, LANES), jnp.bfloat16),
        grid_spec=pltpu.PrefetchScalarGridSpec(
            num_scalar_prefetch=0,
            grid=(grid,),
            in_specs=[in_row_spec, w_spec, b_spec, w_spec, b_spec, w_spec, b_spec],
            out_specs=out_row_spec,
        ),
        compiler_params=pltpu.CompilerParams(
            dimension_semantics=("parallel",),
            vmem_limit_bytes=48 * 1024 * 1024,
        ),
        cost_estimate=cost,
    )(x_packed, packed["w1"], packed["b1"], packed["w2"], packed["b2"],
      packed["w3"], packed["b3"])

    return out_packed.reshape(B2p * PACK, FEAT)[:B]


def init_params(key):
    """Deterministic init mimicking nn.Linear default (uniform +/- 1/sqrt(fan_in))."""
    bound = 1.0 / jnp.sqrt(float(FEAT))
    keys = jax.random.split(key, 6)
    p = {}
    p["w1"] = jax.random.uniform(keys[0], (FEAT, FEAT), jnp.float32, -bound, bound)
    p["b1"] = jax.random.uniform(keys[1], (FEAT,), jnp.float32, -bound, bound)
    p["w2"] = jax.random.uniform(keys[2], (FEAT, FEAT), jnp.float32, -bound, bound)
    p["b2"] = jax.random.uniform(keys[3], (FEAT,), jnp.float32, -bound, bound)
    p["w3"] = jax.random.uniform(keys[4], (FEAT, FEAT), jnp.float32, -bound, bound)
    p["b3"] = jax.random.uniform(keys[5], (FEAT,), jnp.float32, -bound, bound)
    return p


def reference_forward_bf16(x, params):
    """Plain-JAX reference mirroring the kernel numerics (bf16 MXU in, f32 math)."""
    def lin(h, w, b):
        return jnp.dot(h.astype(jnp.bfloat16), w.T.astype(jnp.bfloat16),
                       preferred_element_type=jnp.float32) + b.astype(jnp.float32)
    h = jnp.maximum(lin(x, params["w1"], params["b1"]), 0.0)
    h = jnp.maximum(lin(h, params["w2"], params["b2"]), 0.0)
    z = lin(h, params["w3"], params["b3"])
    return jax.nn.softmax(z, axis=-1)


def reference_forward_f32(x, params):
    """Pure-f32 reference matching the original PyTorch module semantics."""
    h = jnp.maximum(x @ params["w1"].T + params["b1"], 0.0)
    h = jnp.maximum(h @ params["w2"].T + params["b2"], 0.0)
    z = h @ params["w3"].T + params["b3"]
    return jax.nn.softmax(z, axis=-1)


if __name__ == "__main__":
    key = jax.random.PRNGKey(0)
    k_x, k_x2, k_p = jax.random.split(key, 3)

    params = init_params(k_p)
    packed = prepare_params(params)

    # Small-shape check (single tile; 8 rows padded to 16 packed rows).
    B = 8
    x = jax.random.normal(k_x, (B, FEAT), dtype=jnp.float32)
    out = jax.block_until_ready(bp_net_forward(x, packed)).astype(jnp.float32)
    assert out.shape == (B, FEAT)
    ref = reference_forward_bf16(x, params)
    assert jnp.allclose(out, ref, atol=2e-3, rtol=1e-2), "mismatch vs bf16 reference"
    assert jnp.allclose(out, reference_forward_f32(x, params), atol=2e-2), \
        "mismatch vs f32 module reference"
    assert jnp.allclose(jnp.sum(out, axis=-1), 1.0, atol=1e-2), \
        "softmax rows must sum to 1 (approx reciprocal + bf16 out)"

    # Multi-tile check (exercises the even 2-step grid + ragged-tail padding).
    B2 = 2088
    x2 = jax.random.normal(k_x2, (B2, FEAT), dtype=jnp.float32)
    out2 = jax.block_until_ready(bp_net_forward(x2, packed)).astype(jnp.float32)
    ref2 = reference_forward_bf16(x2, params)
    assert out2.shape == (B2, FEAT)
    assert jnp.allclose(out2, ref2, atol=2e-3, rtol=1e-2), "mismatch (multi-tile)"
    assert jnp.allclose(jnp.sum(out2, axis=-1), 1.0, atol=1e-2), \
        "softmax rows must sum to 1 (multi-tile)"

    print("KERNEL_OK")
</pallas_src>

<mosaic_0001>
module attributes {stable_mosaic.version = 11 : i64} {
  func.func @bp_net_kernel(%arg0: i32, %arg1: memref<16x128xf32, #tpu.memory_space<vmem>>, %arg2: memref<128x128xbf16, #tpu.memory_space<vmem>>, %arg3: memref<1x128xf32, #tpu.memory_space<vmem>>, %arg4: memref<128x128xbf16, #tpu.memory_space<vmem>>, %arg5: memref<1x128xf32, #tpu.memory_space<vmem>>, %arg6: memref<128x128xbf16, #tpu.memory_space<vmem>>, %arg7: memref<1x128xf32, #tpu.memory_space<vmem>>, %arg8: memref<16x128xbf16, #tpu.memory_space<vmem>>) attributes {dimension_semantics = [#tpu.dimension_semantics<parallel>], iteration_bounds = array<i64: 1>, scalar_prefetch = 0 : i64, scratch_operands = 0 : i64, tpu.core_type = #tpu.core_type<tc>, window_params = [{transform_indices = @transform_0, window_bounds = array<i64: 16, 128>}, {pipeline_mode = #tpu.pipeline_mode<synchronous>, transform_indices = @transform_1, window_bounds = array<i64: 128, 128>}, {pipeline_mode = #tpu.pipeline_mode<synchronous>, transform_indices = @transform_2, window_bounds = array<i64: 1, 128>}, {pipeline_mode = #tpu.pipeline_mode<synchronous>, transform_indices = @transform_3, window_bounds = array<i64: 128, 128>}, {pipeline_mode = #tpu.pipeline_mode<synchronous>, transform_indices = @transform_4, window_bounds = array<i64: 1, 128>}, {pipeline_mode = #tpu.pipeline_mode<synchronous>, transform_indices = @transform_5, window_bounds = array<i64: 128, 128>}, {pipeline_mode = #tpu.pipeline_mode<synchronous>, transform_indices = @transform_6, window_bounds = array<i64: 1, 128>}, {transform_indices = @transform_7, window_bounds = array<i64: 16, 128>}]} {
    %c0 = arith.constant 0 : index
    %c0_0 = arith.constant 0 : index
    %0 = vector.load %arg1[%c0, %c0_0] : memref<16x128xf32, #tpu.memory_space<vmem>>, vector<16x128xf32>
    %1 = arith.truncf %0 : vector<16x128xf32> to vector<16x128xbf16>
    %c0_1 = arith.constant 0 : index
    %c0_2 = arith.constant 0 : index
    %2 = vector.load %arg2[%c0_1, %c0_2] : memref<128x128xbf16, #tpu.memory_space<vmem>>, vector<128x128xbf16>
    %cst = arith.constant dense<0.000000e+00> : vector<16x128xf32>
    %3 = tpu.matmul %1, %2, %cst {dimension_numbers = #tpu.dot_dimension_numbers<[1], [0], [0], [1], [0, 0, 1, 1], [], []>} : vector<16x128xbf16>, vector<128x128xbf16>, vector<16x128xf32> -> vector<16x128xf32>
    %c0_3 = arith.constant 0 : index
    %c0_4 = arith.constant 0 : index
    %4 = vector.load %arg3[%c0_3, %c0_4] : memref<1x128xf32, #tpu.memory_space<vmem>>, vector<1x128xf32>
    %5 = vector.broadcast %4 : vector<1x128xf32> to vector<16x128xf32>
    %6 = arith.addf %3, %5 : vector<16x128xf32>
    %cst_5 = arith.constant 0.000000e+00 : f32
    %7 = vector.broadcast %cst_5 : f32 to vector<16x128xf32>
    %8 = arith.maximumf %6, %7 : vector<16x128xf32>
    %9 = arith.truncf %8 : vector<16x128xf32> to vector<16x128xbf16>
    %c0_6 = arith.constant 0 : index
    %c0_7 = arith.constant 0 : index
    %10 = vector.load %arg4[%c0_6, %c0_7] : memref<128x128xbf16, #tpu.memory_space<vmem>>, vector<128x128xbf16>
    %cst_8 = arith.constant dense<0.000000e+00> : vector<16x128xf32>
    %11 = tpu.matmul %9, %10, %cst_8 {dimension_numbers = #tpu.dot_dimension_numbers<[1], [0], [0], [1], [0, 0, 1, 1], [], []>} : vector<16x128xbf16>, vector<128x128xbf16>, vector<16x128xf32> -> vector<16x128xf32>
    %c0_9 = arith.constant 0 : index
    %c0_10 = arith.constant 0 : index
    %12 = vector.load %arg5[%c0_9, %c0_10] : memref<1x128xf32, #tpu.memory_space<vmem>>, vector<1x128xf32>
    %13 = vector.broadcast %12 : vector<1x128xf32> to vector<16x128xf32>
    %14 = arith.addf %11, %13 : vector<16x128xf32>
    %cst_11 = arith.constant 0.000000e+00 : f32
    %15 = vector.broadcast %cst_11 : f32 to vector<16x128xf32>
    %16 = arith.maximumf %14, %15 : vector<16x128xf32>
    %17 = arith.truncf %16 : vector<16x128xf32> to vector<16x128xbf16>
    %c0_12 = arith.constant 0 : index
    %c0_13 = arith.constant 0 : index
    %18 = vector.load %arg6[%c0_12, %c0_13] : memref<128x128xbf16, #tpu.memory_space<vmem>>, vector<128x128xbf16>
    %cst_14 = arith.constant dense<0.000000e+00> : vector<16x128xf32>
    %19 = tpu.matmul %17, %18, %cst_14 {dimension_numbers = #tpu.dot_dimension_numbers<[1], [0], [0], [1], [0, 0, 1, 1], [], []>} : vector<16x128xbf16>, vector<128x128xbf16>, vector<16x128xf32> -> vector<16x128xf32>
    %c0_15 = arith.constant 0 : index
    %c0_16 = arith.constant 0 : index
    %20 = vector.load %arg7[%c0_15, %c0_16] : memref<1x128xf32, #tpu.memory_space<vmem>>, vector<1x128xf32>
    %21 = vector.broadcast %20 : vector<1x128xf32> to vector<16x128xf32>
    %22 = arith.addf %19, %21 : vector<16x128xf32>
    %23 = tpu.iota {dimensions = array<i32: 1>} : vector<16x128xi32>
    %c64_i32 = arith.constant 64 : i32
    %24 = vector.broadcast %c64_i32 : i32 to vector<16x128xi32>
    %25 = arith.cmpi slt, %23, %24 : vector<16x128xi32>
    %cst_17 = arith.constant dense<0xFF800000> : vector<16xf32>
    %26 = vector.multi_reduction <maximumf>, %22, %cst_17 [1] : vector<16x128xf32> to vector<16xf32>
    %27 = vector.shape_cast %26 : vector<16xf32> to vector<16x1xf32>
    %28 = vector.broadcast %27 : vector<16x1xf32> to vector<16x128xf32>
    %29 = arith.subf %22, %28 : vector<16x128xf32>
    %30 = math.exp %29 : vector<16x128xf32>
    %cst_18 = arith.constant dense<0.000000e+00> : vector<16xf32>
    %31 = vector.multi_reduction <add>, %30, %cst_18 [1] : vector<16x128xf32> to vector<16xf32>
    %32 = vector.shape_cast %31 : vector<16xf32> to vector<16x1xf32>
    %cst_19 = arith.constant 0.000000e+00 : f32
    %33 = vector.broadcast %cst_19 : f32 to vector<16x128xf32>
    %34 = arith.select %25, %30, %33 : vector<16x128xi1>, vector<16x128xf32>
    %cst_20 = arith.constant dense<0.000000e+00> : vector<16xf32>
    %35 = vector.multi_reduction <add>, %34, %cst_20 [1] : vector<16x128xf32> to vector<16xf32>
    %36 = vector.shape_cast %35 : vector<16xf32> to vector<16x1xf32>
    %37 = arith.subf %32, %36 : vector<16x1xf32>
    %38 = vector.shape_cast %36 : vector<16x1xf32> to vector<16x1xf32>
    %39 = vector.broadcast %38 : vector<16x1xf32> to vector<16x128xf32>
    %40 = vector.shape_cast %37 : vector<16x1xf32> to vector<16x1xf32>
    %41 = vector.broadcast %40 : vector<16x1xf32> to vector<16x128xf32>
    %42 = arith.select %25, %39, %41 : vector<16x128xi1>, vector<16x128xf32>
    %43 = tpu.reciprocal %42 {approx = true} : vector<16x128xf32> -> vector<16x128xf32>
    %44 = arith.mulf %30, %43 : vector<16x128xf32>
    %45 = arith.truncf %44 : vector<16x128xf32> to vector<16x128xbf16>
    %c0_21 = arith.constant 0 : index
    %c0_22 = arith.constant 0 : index
    %46 = vector.load %arg8[%c0_21, %c0_22] : memref<16x128xbf16, #tpu.memory_space<vmem>>, vector<16x128xbf16>
    tpu.vector_store %arg8[%c0_21, %c0_22], %45 {strides = array<i32>} : memref<16x128xbf16, #tpu.memory_space<vmem>>, vector<16x128xbf16>,
    return
  }
  func.func @transform_0(%arg0: i32) -> (i32, i32) {
    %c0_i32 = arith.constant 0 : i32
    %c0_i32_0 = arith.constant 0 : i32
    return %arg0, %c0_i32 : i32, i32
  }
  func.func @transform_1(%arg0: i32) -> (i32, i32) {
    %c0_i32 = arith.constant 0 : i32
    %c0_i32_0 = arith.constant 0 : i32
    %c0_i32_1 = arith.constant 0 : i32
    return %c0_i32, %c0_i32_0 : i32, i32
  }
  func.func @transform_2(%arg0: i32) -> (i32, i32) {
    %c0_i32 = arith.constant 0 : i32
    %c0_i32_0 = arith.constant 0 : i32
    %c0_i32_1 = arith.constant 0 : i32
    return %c0_i32, %c0_i32_0 : i32, i32
  }
  func.func @transform_3(%arg0: i32) -> (i32, i32) {
    %c0_i32 = arith.constant 0 : i32
    %c0_i32_0 = arith.constant 0 : i32
    %c0_i32_1 = arith.constant 0 : i32
    return %c0_i32, %c0_i32_0 : i32, i32
  }
  func.func @transform_4(%arg0: i32) -> (i32, i32) {
    %c0_i32 = arith.constant 0 : i32
    %c0_i32_0 = arith.constant 0 : i32
    %c0_i32_1 = arith.constant 0 : i32
    return %c0_i32, %c0_i32_0 : i32, i32
  }
  func.func @transform_5(%arg0: i32) -> (i32, i32) {
    %c0_i32 = arith.constant 0 : i32
    %c0_i32_0 = arith.constant 0 : i32
    %c0_i32_1 = arith.constant 0 : i32
    return %c0_i32, %c0_i32_0 : i32, i32
  }
  func.func @transform_6(%arg0: i32) -> (i32, i32) {
    %c0_i32 = arith.constant 0 : i32
    %c0_i32_0 = arith.constant 0 : i32
    %c0_i32_1 = arith.constant 0 : i32
    return %c0_i32, %c0_i32_0 : i32, i32
  }
  func.func @transform_7(%arg0: i32) -> (i32, i32) {
    %c0_i32 = arith.constant 0 : i32
    %c0_i32_0 = arith.constant 0 : i32
    return %arg0, %c0_i32 : i32, i32
  }
}

</mosaic_0001>

<llo_original>
// kernel: bp_net_forward.1
$region0: #{bp_net_forward.1}
  #allocation0 [shape = 'u32[]', space=smem, size = 0x4, offset = 0x4, fixed_abs, tag = 'smem constant byte address 0x4 - core index']
  #allocation1 [shape = 'u32[72,128]{1,0:T(1,128)}', space=vmem, size = 0x9000, scoped, tag = 'internal scratch']
  %s0 = inlined_call_operand.vmem [shape: f32[16,128], index: 0, kind: input, shape index: {}]
  %s1 = inlined_call_operand.vmem [shape: bf16[128,128], index: 1, kind: input, shape index: {}]
  %s2 = inlined_call_operand.vmem [shape: f32[1,128], index: 2, kind: input, shape index: {}]
  %s3 = inlined_call_operand.hbm [shape: bf16[128,128], index: 3, kind: input, shape index: {}]
  %s4 = inlined_call_operand.vmem [shape: f32[1,128], index: 4, kind: input, shape index: {}]
  %s5 = inlined_call_operand.hbm [shape: bf16[128,128], index: 5, kind: input, shape index: {}]
  %s6 = inlined_call_operand.vmem [shape: f32[1,128], index: 6, kind: input, shape index: {}]
  %s7 = inlined_call_operand.vmem [shape: bf16[16,128], index: 7, kind: output, shape index: {}]
  %s8 = sld [smem:[#allocation0]]
  $region46: #{bp_net_forward.1} parent=0
    _
  %s10 = ssub.s32 1, %s8
  %s11 = scalar_select 0, %s10, %s8
  $region1: #{bp_net_forward.1} parent=0
    #allocation2 [shape = 'u8[32768]{0}', space=vmem, size = 0x8000, scoped, tag = 'input window, operand 3, single buffered']
    #allocation3 [shape = 's32[1]{0}', space=sflag, size = 0x4, scoped, tag = 'scoped memory for bp_net_forward.1']
    #allocation4 [shape = 'u8[32768]{0}', space=vmem, size = 0x8000, scoped, tag = 'input window, operand 5, single buffered']
    #allocation5 [shape = 's32[1]{0}', space=sflag, size = 0x4, scoped, tag = 'scoped memory for bp_net_forward.1']
    %12 = vsyncpa [#allocation3], 0
    %13 = vsyncpa [#allocation5], 0
    // Predicated region
    $region2: #{bp_net_forward.1} parent=1 // pred_check
      _
    $region3: #{bp_net_forward.1} parent=1 // pred_check_branch
      %15 = sbr.rel (0) target = $region5
    $region4: #{bp_net_forward.1} parent=1 // pred_region
      _
    $region5: #{bp_net_forward.1} parent=1 // pred_fallthru
      _
    // Predicated region
    $region6: #{bp_net_forward.1} parent=1 // pred_check
      _
    $region7: #{bp_net_forward.1} parent=1 // pred_check_branch
      %17 = sbr.rel (0) target = $region9
    $region8: #{bp_net_forward.1} parent=1 // pred_region
      _
    $region9: #{bp_net_forward.1} parent=1 // pred_fallthru
      _
    // Predicated region
    $region10: #{bp_net_forward.1} parent=1 // pred_check
      _
    $region11: #{bp_net_forward.1} parent=1 // pred_check_branch
      %19 = sbr.rel (0) target = $region13
    $region12: #{bp_net_forward.1} parent=1 // pred_region
      _
    $region13: #{bp_net_forward.1} parent=1 // pred_fallthru
      _
    // Predicated region
    $region14: #{bp_net_forward.1} parent=1 // pred_check
      _
    $region15: #{bp_net_forward.1} parent=1 // pred_check_branch
      %21 = sbr.rel (0) target = $region17
    $region16: #{bp_net_forward.1} parent=1 // pred_region
      %23 = vsyncadd [#allocation3], 0
      %s24 = sshll.u32 %s3, 4
      %s25 = int_to_ptr.hbm [resolvable:$true] %s24
      %s26 = sshll.u32 [#allocation2], 4
      %s27 = int_to_ptr.vmem [resolvable:$true] %s26
      %32 = dma.hbm_to_vmem [thread:$0]  %s25, 1024, %s27, [#allocation3], 64, 64, 4
    $region17: #{bp_net_forward.1} parent=1 // pred_fallthru
      _
    // Predicated region
    $region18: #{bp_net_forward.1} parent=1 // pred_check
      _
    $region19: #{bp_net_forward.1} parent=1 // pred_check_branch
      %34 = sbr.rel (0) target = $region21
    $region20: #{bp_net_forward.1} parent=1 // pred_region
      _
    $region21: #{bp_net_forward.1} parent=1 // pred_fallthru
      _
    // Predicated region
    $region22: #{bp_net_forward.1} parent=1 // pred_check
      _
    $region23: #{bp_net_forward.1} parent=1 // pred_check_branch
      %36 = sbr.rel (0) target = $region25
    $region24: #{bp_net_forward.1} parent=1 // pred_region
      %38 = vsyncadd [#allocation5], 0
      %s39 = sshll.u32 %s5, 4
      %s40 = int_to_ptr.hbm [resolvable:$true] %s39
      %s41 = sshll.u32 [#allocation4], 4
      %s42 = int_to_ptr.vmem [resolvable:$true] %s41
      %47 = dma.hbm_to_vmem [thread:$0]  %s40, 1024, %s42, [#allocation5], 64, 64, 4
    $region25: #{bp_net_forward.1} parent=1 // pred_fallthru
      _
    // Predicated region
    $region26: #{bp_net_forward.1} parent=1 // pred_check
      _
    $region27: #{bp_net_forward.1} parent=1 // pred_check_branch
      %49 = sbr.rel (0) target = $region29
    $region28: #{bp_net_forward.1} parent=1 // pred_region
      _
    $region29: #{bp_net_forward.1} parent=1 // pred_fallthru
      _
    // Predicated region
    $region30: #{bp_net_forward.1} parent=1 // pred_check
      _
    $region31: #{bp_net_forward.1} parent=1 // pred_check_branch
      %51 = sbr.rel (0) target = $region33
    $region32: #{bp_net_forward.1} parent=1 // pred_region
      %53 = dma.done [#allocation3], 1024
    $region33: #{bp_net_forward.1} parent=1 // pred_fallthru
      _
    // Predicated region
    $region34: #{bp_net_forward.1} parent=1 // pred_check
      _
    $region35: #{bp_net_forward.1} parent=1 // pred_check_branch
      %55 = sbr.rel (0) target = $region37
    $region36: #{bp_net_forward.1} parent=1 // pred_region
      %57 = dma.done [#allocation5], 1024
    $region37: #{bp_net_forward.1} parent=1 // pred_fallthru
      _
    %v58 = vld [vmem:[%s0] sm:$0xff]
    %v59 = vld [vmem:[%s0 + $0x8] sm:$0xff]
    %v60 = vpack.c.bf16 %v59, %v58
    %v61 = vld [vmem:[%s1] sm:$0xf]
    %v62 = vld [vmem:[%s1 + $0x4] sm:$0xf]
    %v63 = vld [vmem:[%s1 + $0x8] sm:$0xf]
    %v64 = vld [vmem:[%s1 + $0xc] sm:$0xf]
    %v65 = vld [vmem:[%s1 + $0x10] sm:$0xf]
    %v66 = vld [vmem:[%s1 + $0x14] sm:$0xf]
    %v67 = vld [vmem:[%s1 + $0x18] sm:$0xf]
    %v68 = vld [vmem:[%s1 + $0x1c] sm:$0xf]
    %v69 = vld [vmem:[%s1 + $0x20] sm:$0xf]
    %v70 = vld [vmem:[%s1 + $0x24] sm:$0xf]
    %v71 = vld [vmem:[%s1 + $0x28] sm:$0xf]
    %v72 = vld [vmem:[%s1 + $0x2c] sm:$0xf]
    %v73 = vld [vmem:[%s1 + $0x30] sm:$0xf]
    %v74 = vld [vmem:[%s1 + $0x34] sm:$0xf]
    %v75 = vld [vmem:[%s1 + $0x38] sm:$0xf]
    %v76 = vld [vmem:[%s1 + $0x3c] sm:$0xf]
    %v77 = vld [vmem:[%s2] sm:$0x1]
    %v79 = vperm.slane %v77, 0
    %v97 = vunpack.c.l.b16 %v61
    %v98 = vunpack.c.l.b16 %v62
    %v99 = vunpack.c.l.b16 %v63
    %v100 = vunpack.c.l.b16 %v64
    %v101 = vunpack.c.l.b16 %v65
    %v102 = vunpack.c.l.b16 %v66
    %v103 = vunpack.c.l.b16 %v67
    %v104 = vunpack.c.l.b16 %v68
    %v105 = vunpack.c.l.b16 %v69
    %v106 = vunpack.c.l.b16 %v70
    %v107 = vunpack.c.l.b16 %v71
    %v108 = vunpack.c.l.b16 %v72
    %v109 = vunpack.c.l.b16 %v73
    %v110 = vunpack.c.l.b16 %v74
    %v111 = vunpack.c.l.b16 %v75
    %v112 = vunpack.c.l.b16 %v76
    %v113 = vpack.c.b16 %v98, %v97
    %v114 = vpack.c.b16 %v100, %v99
    %v115 = vpack.c.b16 %v102, %v101
    %v116 = vpack.c.b16 %v104, %v103
    %v117 = vpack.c.b16 %v106, %v105
    %v118 = vpack.c.b16 %v108, %v107
    %v119 = vpack.c.b16 %v110, %v109
    %v120 = vpack.c.b16 %v112, %v111
    %129 = vmatpush.bf16.msra.mxu0 %v120
    %130 = vmatpush.bf16.msra.mxu0 %v119
    %131 = vmatpush.bf16.msra.mxu0 %v118
    %132 = vmatpush.bf16.msra.mxu0 %v117
    %133 = vmatpush.bf16.msra.mxu0 %v116
    %134 = vmatpush.bf16.msra.mxu0 %v115
    %135 = vmatpush.bf16.msra.mxu0 %v114
    %136 = vmatpush.bf16.msra.mxu0 %v113
    %137 = vmatmul.bf16.gmra.mxu0 %v60
    %v138 = vpop.f32.mrf.mxu0
    %v139 = vadd.f32 %v79, %v138
    %v140 = vpop.f32.mrf.mxu0
    %v141 = vadd.f32 %v79, %v140
    %142 = vdwg.mxu0
    %v143 = vmax.f32 %v139, 0.0
    %v144 = vmax.f32 %v141, 0.0
    %v145 = vpack.c.bf16 %v144, %v143
    %v146 = vld [vmem:[#allocation2] sm:$0xf]
    %v147 = vld [vmem:[#allocation2 + $0x4] sm:$0xf]
    %v148 = vld [vmem:[#allocation2 + $0x8] sm:$0xf]
    %v149 = vld [vmem:[#allocation2 + $0xc] sm:$0xf]
    %v150 = vld [vmem:[#allocation2 + $0x10] sm:$0xf]
    %v151 = vld [vmem:[#allocation2 + $0x14] sm:$0xf]
    %v152 = vld [vmem:[#allocation2 + $0x18] sm:$0xf]
    %v153 = vld [vmem:[#allocation2 + $0x1c] sm:$0xf]
    %v154 = vld [vmem:[#allocation2 + $0x20] sm:$0xf]
    %v155 = vld [vmem:[#allocation2 + $0x24] sm:$0xf]
    %v156 = vld [vmem:[#allocation2 + $0x28] sm:$0xf]
    %v157 = vld [vmem:[#allocation2 + $0x2c] sm:$0xf]
    %v158 = vld [vmem:[#allocation2 + $0x30] sm:$0xf]
    %v159 = vld [vmem:[#allocation2 + $0x34] sm:$0xf]
    %v160 = vld [vmem:[#allocation2 + $0x38] sm:$0xf]
    %v161 = vld [vmem:[#allocation2 + $0x3c] sm:$0xf]
    %v162 = vld [vmem:[%s4] sm:$0x1]
    %v164 = vperm.slane %v162, 0
    %v182 = vunpack.c.l.b16 %v146
    %v183 = vunpack.c.l.b16 %v147
    %v184 = vunpack.c.l.b16 %v148
    %v185 = vunpack.c.l.b16 %v149
    %v186 = vunpack.c.l.b16 %v150
    %v187 = vunpack.c.l.b16 %v151
    %v188 = vunpack.c.l.b16 %v152
    %v189 = vunpack.c.l.b16 %v153
    %v190 = vunpack.c.l.b16 %v154
    %v191 = vunpack.c.l.b16 %v155
    %v192 = vunpack.c.l.b16 %v156
    %v193 = vunpack.c.l.b16 %v157
    %v194 = vunpack.c.l.b16 %v158
    %v195 = vunpack.c.l.b16 %v159
    %v196 = vunpack.c.l.b16 %v160
    %v197 = vunpack.c.l.b16 %v161
    %v198 = vpack.c.b16 %v183, %v182
    %v199 = vpack.c.b16 %v185, %v184
    %v200 = vpack.c.b16 %v187, %v186
    %v201 = vpack.c.b16 %v189, %v188
    %v202 = vpack.c.b16 %v191, %v190
    %v203 = vpack.c.b16 %v193, %v192
    %v204 = vpack.c.b16 %v195, %v194
    %v205 = vpack.c.b16 %v197, %v196
    %214 = vmatpush.bf16.msra.mxu0 %v205
    %215 = vmatpush.bf16.msra.mxu0 %v204
    %216 = vmatpush.bf16.msra.mxu0 %v203
    %217 = vmatpush.bf16.msra.mxu0 %v202
    %218 = vmatpush.bf16.msra.mxu0 %v201
    %219 = vmatpush.bf16.msra.mxu0 %v200
    %220 = vmatpush.bf16.msra.mxu0 %v199
    %221 = vmatpush.bf16.msra.mxu0 %v198
    %222 = vmatmul.bf16.gmra.mxu0 %v145
    %v223 = vpop.f32.mrf.mxu0
    %v224 = vadd.f32 %v164, %v223
    %v225 = vpop.f32.mrf.mxu0
    %v226 = vadd.f32 %v164, %v225
    %227 = vdwg.mxu0
    %v228 = vmax.f32 %v224, 0.0
    %v229 = vmax.f32 %v226, 0.0
    %v230 = vpack.c.bf16 %v229, %v228
    %v231 = vld [vmem:[#allocation4] sm:$0xf]
    %v232 = vld [vmem:[#allocation4 + $0x4] sm:$0xf]
    %v233 = vld [vmem:[#allocation4 + $0x8] sm:$0xf]
    %v234 = vld [vmem:[#allocation4 + $0xc] sm:$0xf]
    %v235 = vld [vmem:[#allocation4 + $0x10] sm:$0xf]
    %v236 = vld [vmem:[#allocation4 + $0x14] sm:$0xf]
    %v237 = vld [vmem:[#allocation4 + $0x18] sm:$0xf]
    %v238 = vld [vmem:[#allocation4 + $0x1c] sm:$0xf]
    %v239 = vld [vmem:[#allocation4 + $0x20] sm:$0xf]
    %v240 = vld [vmem:[#allocation4 + $0x24] sm:$0xf]
    %v241 = vld [vmem:[#allocation4 + $0x28] sm:$0xf]
    %v242 = vld [vmem:[#allocation4 + $0x2c] sm:$0xf]
    %v243 = vld [vmem:[#allocation4 + $0x30] sm:$0xf]
    %v244 = vld [vmem:[#allocation4 + $0x34] sm:$0xf]
    %v245 = vld [vmem:[#allocation4 + $0x38] sm:$0xf]
    %v246 = vld [vmem:[#allocation4 + $0x3c] sm:$0xf]
    %v247 = vld [vmem:[%s6] sm:$0x1]
    %v249 = vperm.slane %v247, 0
    %v267 = vunpack.c.l.b16 %v231
    %v268 = vunpack.c.l.b16 %v232
    %v269 = vunpack.c.l.b16 %v233
    %v270 = vunpack.c.l.b16 %v234
    %v271 = vunpack.c.l.b16 %v235
    %v272 = vunpack.c.l.b16 %v236
    %v273 = vunpack.c.l.b16 %v237
    %v274 = vunpack.c.l.b16 %v238
    %v275 = vunpack.c.l.b16 %v239
    %v276 = vunpack.c.l.b16 %v240
    %v277 = vunpack.c.l.b16 %v241
    %v278 = vunpack.c.l.b16 %v242
    %v279 = vunpack.c.l.b16 %v243
    %v280 = vunpack.c.l.b16 %v244
    %v281 = vunpack.c.l.b16 %v245
    %v282 = vunpack.c.l.b16 %v246
    %v283 = vpack.c.b16 %v268, %v267
    %v284 = vpack.c.b16 %v270, %v269
    %v285 = vpack.c.b16 %v272, %v271
    %v286 = vpack.c.b16 %v274, %v273
    %v287 = vpack.c.b16 %v276, %v275
    %v288 = vpack.c.b16 %v278, %v277
    %v289 = vpack.c.b16 %v280, %v279
    %v290 = vpack.c.b16 %v282, %v281
    %299 = vmatpush.bf16.msra.mxu0 %v290
    %300 = vmatpush.bf16.msra.mxu0 %v289
    %301 = vmatpush.bf16.msra.mxu0 %v288
    %302 = vmatpush.bf16.msra.mxu0 %v287
    %303 = vmatpush.bf16.msra.mxu0 %v286
    %304 = vmatpush.bf16.msra.mxu0 %v285
    %305 = vmatpush.bf16.msra.mxu0 %v284
    %306 = vmatpush.bf16.msra.mxu0 %v283
    %307 = vmatmul.bf16.gmra.mxu0 %v230
    %v308 = vpop.f32.mrf.mxu0
    %v309 = vadd.f32 %v249, %v308
    %v310 = vpop.f32.mrf.mxu0
    %v311 = vadd.f32 %v249, %v310
    %312 = vdwg.mxu0
    %v313 = vlaneseq
    %v314 = vand.u32 %v313, 127
    %vm315 = vcmp.lt.s32.totalorder %v314, 64
    %316 = vmax.xlane.f32.xlu0 %v309
    %v317 = vpop.xlane.xlu0 %316
    %318 = vmax.xlane.f32.xlu0 %v311
    %v319 = vpop.xlane.xlu0 %318
    %v320 = vsub.f32 %v309, %v317
    %v321 = vsub.f32 %v311, %v319
    %v322 = vmul.f32 %v320, 1.442695
    %v323 = vpow.pop %v322
    %v324 = vmul.f32 %v321, 1.442695
    %v325 = vpow.pop %v324
    %326 = vadd.xlane.f32.xlu0 %v323
    %v327 = vpop.xlane.xlu0 %326
    %328 = vadd.xlane.f32.xlu0 %v325
    %v329 = vpop.xlane.xlu0 %328
    %v330 = vsel %vm315, %v323, 0.0
    %v331 = vsel %vm315, %v325, 0.0
    %332 = vadd.xlane.f32.xlu0 %v330
    %v333 = vpop.xlane.xlu0 %332
    %334 = vadd.xlane.f32.xlu0 %v331
    %v335 = vpop.xlane.xlu0 %334
    %v336 = vsub.f32 %v327, %v333
    %v337 = vsub.f32 %v329, %v335
    %v338 = vsel %vm315, %v333, %v336
    %v339 = vsel %vm315, %v335, %v337
    %v340 = vrcp.pop %v338
    %v341 = vrcp.pop %v339
    %v342 = vmul.f32 %v323, %v340
    %v343 = vmul.f32 %v325, %v341
    %v344 = vpack.c.bf16 %v342, %v342
    %v345 = vpack.c.bf16 %v343, %v343
    %346 = vst [vmem:[%s7] sm:$0xf] %v344
    %347 = vst [vmem:[%s7 + $0x4] sm:$0xf] %v345
    // Predicated region
    $region38: #{bp_net_forward.1} parent=1 // pred_check
      _
    $region39: #{bp_net_forward.1} parent=1 // pred_check_branch
      %349 = sbr.rel (0) target = $region41
    $region40: #{bp_net_forward.1} parent=1 // pred_region
      _
    $region41: #{bp_net_forward.1} parent=1 // pred_fallthru
      _
    // Predicated region
    $region42: #{bp_net_forward.1} parent=1 // pred_check
      _
    $region43: #{bp_net_forward.1} parent=1 // pred_check_branch
      %351 = sbr.rel (0) target = $region45
    $region44: #{bp_net_forward.1} parent=1 // pred_region
      _
    $region45: #{bp_net_forward.1} parent=1 // pred_fallthru
      _
    %352 = vsyncpa [#allocation3], 1
    %353 = vsyncpa [#allocation5], 1

</llo_original>
